<compile_context>
chip_gen: v6e
topology: v6e:2x2x1
jax: 0.10.0
libtpu: 0.0.40
codegen_flags: <defaults>
</compile_context>

<pallas_src>
import functools

import jax
import jax.numpy as jnp
from jax.experimental import pallas as pl
from jax.experimental.pallas import tpu as pltpu


# ---------------------------------------------------------------------------
# Kernel: pure elementwise select + multiply. Stays in the 4-wide VALU slots;
# `negative_scale` is a compile-time Python float (alpha or 1/alpha), so no
# vector divide and no broadcast materialization.
# ---------------------------------------------------------------------------
def _inv_leaky_relu_kernel(x_ref, o_ref, *, negative_scale):
    x = x_ref[...]
    o_ref[...] = jnp.where(x >= 0, x, x * negative_scale)


def _run_elementwise(x2d, negative_scale, tile_rows, vmem_limit_bytes):
    rows, cols = x2d.shape
    grid = -(-rows // tile_rows)  # ceil-div; any partial last block is masked by Pallas
    kernel = functools.partial(_inv_leaky_relu_kernel, negative_scale=negative_scale)
    return pl.pallas_call(
        kernel,
        out_shape=jax.ShapeDtypeStruct((rows, cols), x2d.dtype),
        grid_spec=pltpu.PrefetchScalarGridSpec(
            num_scalar_prefetch=0,
            grid=(grid,),
            in_specs=[pl.BlockSpec((tile_rows, cols), lambda i: (i, 0))],
            out_specs=pl.BlockSpec((tile_rows, cols), lambda i: (i, 0)),
        ),
        compiler_params=pltpu.CompilerParams(
            dimension_semantics=("parallel",),
            vmem_limit_bytes=int(vmem_limit_bytes),
        ),
    )(x2d)


# Widest lane dims first: large multiples of 128 -> unmasked stores, big DMAs.
_LANE_CANDIDATES = (8192, 4096, 2048, 1024, 512, 256, 128)

# Below this total size a standalone pallas_call launch + DMA setup dominates;
# let XLA fuse a plain jnp.where into neighboring ops instead.
_MIN_PALLAS_BYTES = 256 * 1024


@functools.lru_cache(maxsize=1)
def _tpu_tuning():
    """Returns (target_block_bytes, min_grid_steps) for the local TPU generation."""
    kind = ""
    try:
        kind = (getattr(jax.devices()[0], "device_kind", "") or "").lower()
    except Exception:
        pass
    if ("7x" in kind) or ("v7" in kind):
        # v7x: 2 TensorCores, ~3.2 TB/s HBM -> bigger blocks to amortize the
        # ~0.35 us per-step overhead, and >=2 grid steps so both TCs get work.
        return 4 * 1024 * 1024, 2
    if "v6" in kind:
        # v6e: ~86% of roofline at 4 MiB-class blocks; 4 buffers = 16 MiB < 32 MiB default.
        return 4 * 1024 * 1024, 1
    # v5e / unknown: 16 MiB default scoped VMEM -> keep 2 MiB blocks (4 buffers = 8 MiB).
    return 2 * 1024 * 1024, 1


def _pick_tile_rows(rows, cols, itemsize, sublane, target_bytes, min_grid):
    bytes_per_row = cols * itemsize
    rows_target = max(1, target_bytes // bytes_per_row)
    # Guarantee >= min_grid steps (megacore sharding on v7x) when there is
    # enough data to give every step at least one full sublane tile.
    if min_grid > 1 and rows >= min_grid * sublane:
        rows_target = min(rows_target, -(-rows // min_grid))
    if rows_target >= rows:
        return rows  # whole row extent in one block (full-extent dims are always legal)
    base = max(sublane, (rows_target // sublane) * sublane)
    # Prefer the largest sublane-multiple <= base that divides rows evenly:
    # avoids a masked partial last block / under-filled final DMA.
    cand = base
    while cand >= sublane:
        if rows % cand == 0:
            return cand
        cand -= sublane
    return base


def inv_leaky_relu(x, alpha=0.9, reverse=False, use_pallas=None):
    """Pallas implementation of InvLeakyRelu.forward / .reverse.

    x: any shape (e.g. (B, C, 1, 1) inside ConditionalFlow). Elementwise, layout preserved.
    Returns (h, 0.0) for forward, h for reverse (matching the PyTorch module).

    use_pallas: None -> auto (Pallas only when the element count is a multiple of 128
    and total bytes >= 256 KiB); True forces the Pallas path when possible; False forces
    the fused-XLA path. Inputs whose element count is not a multiple of 128 always use
    the XLA path (one read + one write, same HBM traffic as the kernel, no pad/slice).
    """
    negative_scale = (1.0 / float(alpha)) if reverse else float(alpha)
    n = int(x.size)
    itemsize = int(x.dtype.itemsize)
    nbytes = n * itemsize
    aligned = (n > 0) and (n % 128 == 0)

    if use_pallas is None:
        use_pallas = aligned and nbytes >= _MIN_PALLAS_BYTES
    use_pallas = bool(use_pallas) and aligned

    if not use_pallas:
        # Fused elementwise op in the wrapper; XLA will fuse it with neighbors.
        h = jnp.where(x >= 0, x, x * negative_scale)
    else:
        sublane = max(8, 8 * (4 // max(1, itemsize)))  # f32: 8, bf16: 16, int8/fp8: 32
        # Pick the widest lane dim that divides the element count (prefer one that
        # also leaves at least a full sublane tile of rows).
        cols = None
        for c in _LANE_CANDIDATES:
            if n % c == 0 and (n // c) >= sublane:
                cols = c
                break
        if cols is None:
            for c in _LANE_CANDIDATES:
                if n % c == 0:
                    cols = c
                    break
        rows = n // cols
        block_bytes, min_grid = _tpu_tuning()
        tile_rows = _pick_tile_rows(rows, cols, itemsize, sublane, block_bytes, min_grid)
        # 2 input + 2 output double-buffered blocks in flight + 50% headroom.
        vmem_limit = max(16 * 1024 * 1024, 6 * block_bytes)
        h2d = _run_elementwise(x.reshape(rows, cols), negative_scale, tile_rows, vmem_limit)
        h = h2d.reshape(x.shape)

    if reverse:
        return h
    return (h, 0.0)


if __name__ == "__main__":
    alpha = 0.9
    key = jax.random.PRNGKey(0)
    k1, k2, k3 = jax.random.split(key, 3)

    # 1) Module-consistent flat-flow activation (B, C, 1, 1); force the Pallas path.
    x = jax.random.normal(k1, (8, 64, 1, 1), dtype=jnp.float32)
    h, logdet = inv_leaky_relu(x, alpha=alpha, reverse=False, use_pallas=True)
    h = jax.block_until_ready(h)
    h_ref = jnp.where(x >= 0, x, x * alpha)
    assert logdet == 0.0
    assert jnp.allclose(h, h_ref, atol=1e-6), "forward mismatch"
    x_rec = jax.block_until_ready(
        inv_leaky_relu(h, alpha=alpha, reverse=True, use_pallas=True))
    assert jnp.allclose(x_rec, x, rtol=1e-5, atol=1e-6), "reverse mismatch"

    # 2) Larger activation -> auto dispatch picks Pallas; exercises the multi-block grid
    #    (and the >=2-step split on v7x).
    xl = jax.random.normal(k2, (256, 256, 4, 4), dtype=jnp.float32)  # 4 MiB
    hl, _ = inv_leaky_relu(xl, alpha=alpha, reverse=False)
    hl = jax.block_until_ready(hl)
    assert jnp.allclose(hl, jnp.where(xl >= 0, xl, xl * alpha), atol=1e-6), \
        "forward mismatch (large)"

    # 3) bf16: dtype preserved inside the kernel (halves HBM bytes moved).
    xb = x.astype(jnp.bfloat16)
    hb, _ = inv_leaky_relu(xb, alpha=alpha, reverse=False, use_pallas=True)
    hb = jax.block_until_ready(hb)
    assert hb.dtype == jnp.bfloat16
    assert jnp.allclose(
        hb.astype(jnp.float32),
        jnp.where(xb >= 0, xb, xb * alpha).astype(jnp.float32),
        atol=1e-2,
    ), "forward mismatch (bf16)"

    # 4) Non-128-divisible / tiny input -> wrapper dispatches to the fused XLA path
    #    (no pad, no tail slice, single read+write pass).
    xs = jax.random.normal(k3, (2, 3, 5, 7), dtype=jnp.float32)
    hs, lds = inv_leaky_relu(xs, alpha=alpha, reverse=False)
    hs = jax.block_until_ready(hs)
    assert lds == 0.0
    assert jnp.allclose(hs, jnp.where(xs >= 0, xs, xs * alpha), atol=1e-6), \
        "forward mismatch (xla fallback)"

    print("KERNEL_OK")
</pallas_src>

<mosaic_0001>
module attributes {stable_mosaic.version = 11 : i64} {
  func.func @_inv_leaky_relu_kernel(%arg0: i32, %arg1: memref<1x512xf32, #tpu.memory_space<vmem>>, %arg2: memref<1x512xf32, #tpu.memory_space<vmem>>) attributes {dimension_semantics = [#tpu.dimension_semantics<parallel>], iteration_bounds = array<i64: 1>, scalar_prefetch = 0 : i64, scratch_operands = 0 : i64, tpu.core_type = #tpu.core_type<tc>, window_params = [{transform_indices = @transform_0, window_bounds = array<i64: 1, 512>}, {transform_indices = @transform_1, window_bounds = array<i64: 1, 512>}]} {
    %c0 = arith.constant 0 : index
    %c0_0 = arith.constant 0 : index
    %0 = vector.load %arg1[%c0, %c0_0] : memref<1x512xf32, #tpu.memory_space<vmem>>, vector<1x512xf32>
    %cst = arith.constant 0.000000e+00 : f32
    %1 = vector.broadcast %cst : f32 to vector<1x512xf32>
    %2 = arith.cmpf oge, %0, %1 : vector<1x512xf32>
    %cst_1 = arith.constant 0.899999976 : f32
    %3 = vector.broadcast %cst_1 : f32 to vector<1x512xf32>
    %4 = arith.mulf %0, %3 : vector<1x512xf32>
    %5 = arith.select %2, %0, %4 : vector<1x512xi1>, vector<1x512xf32>
    %c0_2 = arith.constant 0 : index
    %c0_3 = arith.constant 0 : index
    %6 = vector.load %arg2[%c0_2, %c0_3] : memref<1x512xf32, #tpu.memory_space<vmem>>, vector<1x512xf32>
    tpu.vector_store %arg2[%c0_2, %c0_3], %5 {strides = array<i32>} : memref<1x512xf32, #tpu.memory_space<vmem>>, vector<1x512xf32>,
    return
  }
  func.func @transform_0(%arg0: i32) -> (i32, i32) {
    %c0_i32 = arith.constant 0 : i32
    %c0_i32_0 = arith.constant 0 : i32
    return %arg0, %c0_i32 : i32, i32
  }
  func.func @transform_1(%arg0: i32) -> (i32, i32) {
    %c0_i32 = arith.constant 0 : i32
    %c0_i32_0 = arith.constant 0 : i32
    return %arg0, %c0_i32 : i32, i32
  }
}

</mosaic_0001>

<llo_original>
// kernel: tpu_custom_call.1
$region0: #{tpu_custom_call.1}
  #allocation0 [shape = 'u32[]', space=smem, size = 0x4, offset = 0x4, fixed_abs, tag = 'smem constant byte address 0x4 - core index']
  #allocation1 [shape = 'u32[144,128]{1,0:T(1,128)}', space=vmem, size = 0x12000, scoped, tag = 'internal scratch']
  %s0 = inlined_call_operand.hbm [shape: f32[1,512], index: 0, kind: input, shape index: {}]
  %s1 = inlined_call_operand.hbm [shape: f32[1,512], index: 1, kind: output, shape index: {}]
  %s2 = sld [smem:[#allocation0]]
  $region18: #{tpu_custom_call.1} parent=0
    _
  %s4 = ssub.s32 1, %s2
  %s5 = scalar_select 0, %s4, %s2
  $region1: #{tpu_custom_call.1} parent=0
    #allocation2 [shape = 'u8[2048]{0}', space=vmem, size = 0x800, scoped, tag = 'input window, operand 0, single buffered']
    #allocation3 [shape = 's32[1]{0}', space=sflag, size = 0x4, scoped, tag = 'scoped memory for tpu_custom_call.1']
    #allocation4 [shape = 's32[1]{0}', space=sflag, size = 0x4, scoped, tag = 'scoped memory for tpu_custom_call.1']
    #allocation5 [shape = 'u8[2048]{0}', space=vmem, size = 0x800, scoped, tag = 'output window, operand 0, single buffered']
    %6 = vsyncpa [#allocation3], 0
    %7 = vsyncpa [#allocation4], 0
    // Predicated region
    $region2: #{tpu_custom_call.1} parent=1 // pred_check
      _
    $region3: #{tpu_custom_call.1} parent=1 // pred_check_branch
      %9 = sbr.rel (0) target = $region5
    $region4: #{tpu_custom_call.1} parent=1 // pred_region
      %s11 = ssub.s32 64, 64
      %12 = vsyncadd [#allocation3], %s11
      %s14 = sshll.u32 [#allocation2], 4
      %s15 = int_to_ptr.vmem [resolvable:$true] %s14
      %17 = dma.hbm_to_vmem [thread:$0]  %s0, 64, %s15, [#allocation3]
    $region5: #{tpu_custom_call.1} parent=1 // pred_fallthru
      _
    // Predicated region
    $region6: #{tpu_custom_call.1} parent=1 // pred_check
      _
    $region7: #{tpu_custom_call.1} parent=1 // pred_check_branch
      %19 = sbr.rel (0) target = $region9
    $region8: #{tpu_custom_call.1} parent=1 // pred_region
      %20 = dma.done [#allocation3], 64
    $region9: #{tpu_custom_call.1} parent=1 // pred_fallthru
      _
    %v21 = vld [vmem:[#allocation2] sm:$0xf]
    %vm22 = vcmp.ge.f32.partialorder %v21, 0.0
    %v23 = vmul.f32 %v21, 0.9
    %v24 = vsel %vm22, %v21, %v23
    %v25 = vlaneseq
    %vm26 = vcmp.ge.s32.totalorder %v25, 0
    %vm27 = vcmp.lt.s32.totalorder %v25, 512
    %vm28 = vmand %vm26, %vm27
    %29 = vst.msk [vmem:[#allocation5] sm:$0xf] %vm28, %v24
    // Predicated region
    $region10: #{tpu_custom_call.1} parent=1 // pred_check
      _
    $region11: #{tpu_custom_call.1} parent=1 // pred_check_branch
      %31 = sbr.rel (0) target = $region13
    $region12: #{tpu_custom_call.1} parent=1 // pred_region
      %s33 = ssub.s32 64, 64
      %34 = vsyncadd [#allocation4], %s33
      %s36 = sshll.u32 [#allocation5], 4
      %s37 = int_to_ptr.vmem [resolvable:$true] %s36
      %39 = dma.vmem_to_hbm [thread:$0]  %s37, 64, %s1, [#allocation4]
    $region13: #{tpu_custom_call.1} parent=1 // pred_fallthru
      _
    // Predicated region
    $region14: #{tpu_custom_call.1} parent=1 // pred_check
      _
    $region15: #{tpu_custom_call.1} parent=1 // pred_check_branch
      %41 = sbr.rel (0) target = $region17
    $region16: #{tpu_custom_call.1} parent=1 // pred_region
      %42 = dma.done [#allocation4], 64
    $region17: #{tpu_custom_call.1} parent=1 // pred_fallthru
      _
    %43 = vsyncpa [#allocation3], 1
    %44 = vsyncpa [#allocation4], 1

</llo_original>
